<compile_context>
chip_gen: v7x
topology: tpu7x:2x2x1
jax: 0.10.0
libtpu: 0.0.40
codegen_flags: <defaults>
</compile_context>

<pallas_src>
import functools

import jax
import jax.numpy as jnp
from jax.experimental import pallas as pl
from jax.experimental.pallas import tpu as pltpu


def _ast_pool_kernel(feat_ref, w1_ref, b1_ref, w2_ref, out_ref, *, n_real):
    """Attention pooling over patches for one batch tile.

    feat_ref : (TB, NP, H)  bf16  patch features (NP = N padded up to a multiple of 8)
    w1_ref   : (H, H2)      bf16  attention hidden weight
    b1_ref   : (1, H2)      f32   attention hidden bias
    w2_ref   : (1, H2)      bf16  attention score weight as a row (b2 cancels in softmax)
    out_ref  : (TB, H)      f32   attention-pooled features
    """
    TB, NP, H = feat_ref.shape
    H2 = w1_ref.shape[1]

    feat = feat_ref[...]                                          # (TB, NP, H) bf16

    # Attention hidden: one (TB*NP, H) x (H, H2) MXU matmul, f32 accumulation.
    # NP % 8 == 0 (wrapper pads), so this reshape is a layout-free view (no relayout copy).
    h = jnp.tanh(
        jnp.dot(feat.reshape(TB * NP, H), w1_ref[...],
                preferred_element_type=jnp.float32) + b1_ref[...]
    ).astype(jnp.bfloat16)                                        # (TB*NP, H2) — bf16 halves the biggest intermediate

    # Attention scores, lane-dense (TB, NP): VPU multiply + f32 lane reduce.
    # Keeps the width-1 mat-vec off the MXU; b2 omitted (uniform shift cancels in softmax).
    prod = h.reshape(TB, NP, H2) * w2_ref[...]                    # bf16, layout-free reshape
    s = jnp.sum(prod.astype(jnp.float32), axis=-1)                # (TB, NP) f32

    # Mask zero-padded patches so they receive zero softmax weight.
    if NP != n_real:
        patch = jax.lax.broadcasted_iota(jnp.int32, (TB, NP), 1)
        s = jnp.where(patch < n_real, s, -jnp.inf)

    # Softmax over patches (dim=0 per batch item in the PyTorch code -> last axis here).
    m = jnp.max(s, axis=-1, keepdims=True)                        # (TB, 1)
    e = jnp.exp(s - m)                                            # (TB, NP)
    w = (e / jnp.sum(e, axis=-1, keepdims=True)).astype(jnp.bfloat16)

    # Attention pooling on the MXU: one (1, NP) x (NP, H) matmul per batch row
    # (static unroll over the small TB).  No f32 copy of the feature block.
    rows = []
    for b in range(TB):
        rows.append(jnp.dot(w[b:b + 1, :], feat[b],
                            preferred_element_type=jnp.float32))  # (1, H) f32
    out_ref[...] = jnp.concatenate(rows, axis=0)                  # (TB, H) f32, lane-dense


def ast_pool_proj(features, params, *, tb=8):
    """features: [B, N, H] float32; returns [B, out_dim] float32.

    tb: batch tile.  ~4-8 on v7x (64 MiB VMEM), 8-16 on v5e/v6e at real AST scale.
    """
    B, N, H = features.shape
    H2 = params["w1"].shape[1]

    # Batch tiling: pad B up to a multiple of TB (zero rows are sliced off afterwards).
    if B <= tb:
        TB = B                                     # single grid step, block == full extent
    else:
        TB = max(8, (tb // 8) * 8)                 # keep the (TB, H) output block sublane-aligned
    B_pad = pl.cdiv(B, TB) * TB

    # Pad the patch axis to a multiple of 8 so the in-kernel reshapes are layout-free;
    # padded patches are masked to -inf before the softmax inside the kernel.
    NP = pl.cdiv(N, 8) * 8

    feat = features
    if B_pad != B or NP != N:
        feat = jnp.pad(feat, ((0, B_pad - B), (0, NP - N), (0, 0)))

    # bf16 operands for the MXU matmuls, f32 accumulation inside the kernel.
    feat_bf = feat.astype(jnp.bfloat16)
    w1_bf = params["w1"].astype(jnp.bfloat16)
    b1_f = params["b1"].reshape(1, H2).astype(jnp.float32)
    w2_bf = params["w2"].reshape(1, H2).astype(jnp.bfloat16)      # (H2, 1) column -> (1, H2) row

    kernel = functools.partial(_ast_pool_kernel, n_real=N)

    pooled = pl.pallas_call(
        kernel,
        out_shape=jax.ShapeDtypeStruct((B_pad, H), jnp.float32),
        grid=(B_pad // TB,),
        in_specs=[
            pl.BlockSpec((TB, NP, H), lambda b: (b, 0, 0)),       # features (batch tile)
            pl.BlockSpec((H, H2), lambda b: (0, 0)),              # attention W1 (resident, <1 MiB bf16)
            pl.BlockSpec((1, H2), lambda b: (0, 0)),              # attention b1
            pl.BlockSpec((1, H2), lambda b: (0, 0)),              # attention w2 row
        ],
        out_specs=pl.BlockSpec((TB, H), lambda b: (b, 0)),        # lane-dense pooled features
        compiler_params=pltpu.CompilerParams(
            dimension_semantics=("parallel",),
            vmem_limit_bytes=48 * 1024 * 1024,
        ),
    )(feat_bf, w1_bf, b1_f, w2_bf)

    # Final projection (M=B rows, negligible flops) in f32 outside the kernel: avoids
    # wp/bp VMEM residency and an OUT-padded writeback; costs one tiny (B,H) HBM round trip.
    return pooled[:B] @ params["wp"] + params["bp"]


def stub_ast_features(x, feat_proj):
    # TODO(synk): the pretrained ASTFeatureExtractor + frozen ASTModel backbone (HuggingFace
    # checkpoint) has no in-script equivalent; this deterministic stand-in frames the waveform
    # and linearly projects each frame to the hidden size to produce patch features [B, N, H].
    if x.ndim == 3:
        x = x[:, 0, :]                       # squeeze(1): [B, 1, T] -> [B, T]
    B, T = x.shape
    frame = feat_proj.shape[0]
    N = T // frame
    frames = x[:, : N * frame].reshape(B, N, frame)
    return frames @ feat_proj                # [B, N, H]


def _reference(features, params):
    # Faithful f32 reference (keeps b2, matching the PyTorch module exactly).
    h = jnp.tanh(jnp.einsum("bnh,hk->bnk", features, params["w1"]) + params["b1"])
    s = (jnp.einsum("bnk,ko->bno", h, params["w2"]) + params["b2"])[..., 0]   # [B, N]
    w = jax.nn.softmax(s, axis=1)
    pooled = jnp.einsum("bn,bnh->bh", w, features)
    return pooled @ params["wp"] + params["bp"]


if __name__ == "__main__":
    B, T = 2, 256                     # small audio: [B, 1, T]
    N, H, H2, OUT = 8, 32, 16, 64     # patches, hidden, hidden//2, out_dim
    frame = T // N

    key = jax.random.PRNGKey(0)
    ks = jax.random.split(key, 8)

    x = jax.random.normal(ks[0], (B, 1, T), dtype=jnp.float32)
    feat_proj = 0.1 * jax.random.normal(ks[1], (frame, H), dtype=jnp.float32)

    def lin_init(k, fan_in, shape):
        bound = 1.0 / float(fan_in) ** 0.5
        return jax.random.uniform(k, shape, jnp.float32, -bound, bound)

    params = {
        "w1": lin_init(ks[2], H, (H, H2)),
        "b1": lin_init(ks[3], H, (1, H2)),
        "w2": lin_init(ks[4], H2, (H2, 1)),
        "b2": lin_init(ks[5], H2, (1, 1)),
        "wp": lin_init(ks[6], H, (H, OUT)),
        "bp": lin_init(ks[7], H, (1, OUT)),
    }

    feats = stub_ast_features(x, feat_proj)           # [B, N, H]
    out = ast_pool_proj(feats, params)                # [B, OUT]
    out = jax.block_until_ready(out)

    ref = _reference(feats, params)
    assert out.shape == (B, OUT)
    # tolerance loosened vs. the f32 reference because kernel matmul operands are bf16
    # (accumulation stays f32)
    assert jnp.allclose(out, ref, atol=2e-2, rtol=2e-2), "mismatch vs JAX reference"
    print("KERNEL_OK")
</pallas_src>

<mosaic_0001>
module attributes {stable_mosaic.version = 11 : i64} {
  func.func @_ast_pool_kernel(%arg0: i32, %arg1: memref<2x8x32xbf16, #tpu.memory_space<vmem>>, %arg2: memref<32x16xbf16, #tpu.memory_space<vmem>>, %arg3: memref<1x16xf32, #tpu.memory_space<vmem>>, %arg4: memref<1x16xbf16, #tpu.memory_space<vmem>>, %arg5: memref<2x32xf32, #tpu.memory_space<vmem>>) attributes {dimension_semantics = [#tpu.dimension_semantics<parallel>], iteration_bounds = array<i64: 1>, scalar_prefetch = 0 : i64, scratch_operands = 0 : i64, tpu.core_type = #tpu.core_type<tc>, window_params = [{transform_indices = @transform_0, window_bounds = array<i64: 2, 8, 32>}, {pipeline_mode = #tpu.pipeline_mode<synchronous>, transform_indices = @transform_1, window_bounds = array<i64: 32, 16>}, {pipeline_mode = #tpu.pipeline_mode<synchronous>, transform_indices = @transform_2, window_bounds = array<i64: 1, 16>}, {pipeline_mode = #tpu.pipeline_mode<synchronous>, transform_indices = @transform_3, window_bounds = array<i64: 1, 16>}, {transform_indices = @transform_4, window_bounds = array<i64: 2, 32>}]} {
    %c0 = arith.constant 0 : index
    %c0_0 = arith.constant 0 : index
    %c0_1 = arith.constant 0 : index
    %0 = vector.load %arg1[%c0, %c0_0, %c0_1] : memref<2x8x32xbf16, #tpu.memory_space<vmem>>, vector<2x8x32xbf16>
    %1 = vector.shape_cast %0 : vector<2x8x32xbf16> to vector<16x32xbf16>
    %c0_2 = arith.constant 0 : index
    %c0_3 = arith.constant 0 : index
    %2 = vector.load %arg2[%c0_2, %c0_3] : memref<32x16xbf16, #tpu.memory_space<vmem>>, vector<32x16xbf16>
    %cst = arith.constant dense<0.000000e+00> : vector<16x16xf32>
    %3 = tpu.matmul %1, %2, %cst {dimension_numbers = #tpu.dot_dimension_numbers<[1], [0], [0], [1], [0, 0, 1, 1], [], []>} : vector<16x32xbf16>, vector<32x16xbf16>, vector<16x16xf32> -> vector<16x16xf32>
    %c0_4 = arith.constant 0 : index
    %c0_5 = arith.constant 0 : index
    %4 = vector.load %arg3[%c0_4, %c0_5] : memref<1x16xf32, #tpu.memory_space<vmem>>, vector<1x16xf32>
    %5 = vector.broadcast %4 : vector<1x16xf32> to vector<16x16xf32>
    %6 = arith.addf %3, %5 : vector<16x16xf32>
    %7 = math.tanh %6 : vector<16x16xf32>
    %8 = arith.truncf %7 : vector<16x16xf32> to vector<16x16xbf16>
    %9 = vector.shape_cast %8 : vector<16x16xbf16> to vector<2x8x16xbf16>
    %c0_6 = arith.constant 0 : index
    %c0_7 = arith.constant 0 : index
    %10 = vector.load %arg4[%c0_6, %c0_7] : memref<1x16xbf16, #tpu.memory_space<vmem>>, vector<1x16xbf16>
    %11 = vector.shape_cast %10 : vector<1x16xbf16> to vector<1x1x16xbf16>
    %12 = vector.broadcast %11 : vector<1x1x16xbf16> to vector<2x8x16xbf16>
    %13 = arith.mulf %9, %12 : vector<2x8x16xbf16>
    %14 = arith.extf %13 : vector<2x8x16xbf16> to vector<2x8x16xf32>
    %cst_8 = arith.constant dense<0.000000e+00> : vector<2x8xf32>
    %15 = vector.multi_reduction <add>, %14, %cst_8 [2] : vector<2x8x16xf32> to vector<2x8xf32>
    %cst_9 = arith.constant dense<0xFF800000> : vector<2xf32>
    %16 = vector.multi_reduction <maximumf>, %15, %cst_9 [1] : vector<2x8xf32> to vector<2xf32>
    %17 = vector.shape_cast %16 : vector<2xf32> to vector<2x1xf32>
    %18 = vector.broadcast %17 : vector<2x1xf32> to vector<2x8xf32>
    %19 = arith.subf %15, %18 : vector<2x8xf32>
    %20 = math.exp %19 : vector<2x8xf32>
    %cst_10 = arith.constant dense<0.000000e+00> : vector<2xf32>
    %21 = vector.multi_reduction <add>, %20, %cst_10 [1] : vector<2x8xf32> to vector<2xf32>
    %22 = vector.shape_cast %21 : vector<2xf32> to vector<2x1xf32>
    %23 = vector.broadcast %22 : vector<2x1xf32> to vector<2x8xf32>
    %24 = arith.divf %20, %23 : vector<2x8xf32>
    %25 = arith.truncf %24 : vector<2x8xf32> to vector<2x8xbf16>
    %26 = vector.extract_strided_slice %25 {offsets = [0, 0], sizes = [1, 8], strides = [1, 1]} : vector<2x8xbf16> to vector<1x8xbf16>
    %27 = vector.extract_strided_slice %0 {offsets = [0, 0, 0], sizes = [1, 8, 32], strides = [1, 1, 1]} : vector<2x8x32xbf16> to vector<1x8x32xbf16>
    %28 = vector.shape_cast %27 : vector<1x8x32xbf16> to vector<8x32xbf16>
    %cst_11 = arith.constant dense<0.000000e+00> : vector<1x32xf32>
    %29 = tpu.matmul %26, %28, %cst_11 {dimension_numbers = #tpu.dot_dimension_numbers<[1], [0], [0], [1], [0, 0, 1, 1], [], []>} : vector<1x8xbf16>, vector<8x32xbf16>, vector<1x32xf32> -> vector<1x32xf32>
    %30 = vector.extract_strided_slice %25 {offsets = [1, 0], sizes = [1, 8], strides = [1, 1]} : vector<2x8xbf16> to vector<1x8xbf16>
    %31 = vector.extract_strided_slice %0 {offsets = [1, 0, 0], sizes = [1, 8, 32], strides = [1, 1, 1]} : vector<2x8x32xbf16> to vector<1x8x32xbf16>
    %32 = vector.shape_cast %31 : vector<1x8x32xbf16> to vector<8x32xbf16>
    %cst_12 = arith.constant dense<0.000000e+00> : vector<1x32xf32>
    %33 = tpu.matmul %30, %32, %cst_12 {dimension_numbers = #tpu.dot_dimension_numbers<[1], [0], [0], [1], [0, 0, 1, 1], [], []>} : vector<1x8xbf16>, vector<8x32xbf16>, vector<1x32xf32> -> vector<1x32xf32>
    %34 = tpu.concatenate %29, %33 in 0 : vector<1x32xf32>, vector<1x32xf32> -> vector<2x32xf32>
    %c0_13 = arith.constant 0 : index
    %c0_14 = arith.constant 0 : index
    %35 = vector.load %arg5[%c0_13, %c0_14] : memref<2x32xf32, #tpu.memory_space<vmem>>, vector<2x32xf32>
    tpu.vector_store %arg5[%c0_13, %c0_14], %34 {strides = array<i32>} : memref<2x32xf32, #tpu.memory_space<vmem>>, vector<2x32xf32>,
    return
  }
  func.func @transform_0(%arg0: i32) -> (i32, i32, i32) {
    %c0_i32 = arith.constant 0 : i32
    %c0_i32_0 = arith.constant 0 : i32
    %c0_i32_1 = arith.constant 0 : i32
    return %arg0, %c0_i32, %c0_i32_0 : i32, i32, i32
  }
  func.func @transform_1(%arg0: i32) -> (i32, i32) {
    %c0_i32 = arith.constant 0 : i32
    %c0_i32_0 = arith.constant 0 : i32
    %c0_i32_1 = arith.constant 0 : i32
    return %c0_i32, %c0_i32_0 : i32, i32
  }
  func.func @transform_2(%arg0: i32) -> (i32, i32) {
    %c0_i32 = arith.constant 0 : i32
    %c0_i32_0 = arith.constant 0 : i32
    %c0_i32_1 = arith.constant 0 : i32
    return %c0_i32, %c0_i32_0 : i32, i32
  }
  func.func @transform_3(%arg0: i32) -> (i32, i32) {
    %c0_i32 = arith.constant 0 : i32
    %c0_i32_0 = arith.constant 0 : i32
    %c0_i32_1 = arith.constant 0 : i32
    return %c0_i32, %c0_i32_0 : i32, i32
  }
  func.func @transform_4(%arg0: i32) -> (i32, i32) {
    %c0_i32 = arith.constant 0 : i32
    %c0_i32_0 = arith.constant 0 : i32
    return %arg0, %c0_i32 : i32, i32
  }
}

</mosaic_0001>

<llo_original>
// kernel: tpu_custom_call.1
$region0: #{tpu_custom_call.1}
  #allocation0 [shape = 'u32[]', space=smem, size = 0x4, offset = 0x4, fixed_abs, tag = 'smem constant byte address 0x4 - core index']
  #allocation1 [shape = 'u32[144,128]{1,0:T(1,128)}', space=vmem, size = 0x12000, scoped, tag = 'internal scratch']
  %s0 = inlined_call_operand.vmem [shape: bf16[2,8,32], index: 0, kind: input, shape index: {}]
  %s1 = inlined_call_operand.vmem [shape: bf16[32,16], index: 1, kind: input, shape index: {}]
  %s2 = inlined_call_operand.vmem [shape: f32[1,16], index: 2, kind: input, shape index: {}]
  %s3 = inlined_call_operand.vmem [shape: bf16[1,16], index: 3, kind: input, shape index: {}]
  %s4 = inlined_call_operand.hbm [shape: f32[2,32], index: 4, kind: output, shape index: {}]
  %s5 = sld [smem:[#allocation0]]
  $region26: #{tpu_custom_call.1} parent=0
    _
  %s7 = ssub.s32 1, %s5
  %s8 = scalar_select 0, %s7, %s5
  $region1: #{tpu_custom_call.1} parent=0
    #allocation2 [shape = 'u8[1024]{0}', space=vmem, size = 0x400, scoped, tag = 'output window, operand 0, single buffered']
    #allocation3 [shape = 's32[1]{0}', space=sflag, size = 0x4, scoped, tag = 'scoped memory for tpu_custom_call.1']
    %9 = vsyncpa [#allocation3], 0
    // Predicated region
    $region2: #{tpu_custom_call.1} parent=1 // pred_check
      _
    $region3: #{tpu_custom_call.1} parent=1 // pred_check_branch
      %11 = sbr.rel (0) target = $region5
    $region4: #{tpu_custom_call.1} parent=1 // pred_region
      _
    $region5: #{tpu_custom_call.1} parent=1 // pred_fallthru
      _
    // Predicated region
    $region6: #{tpu_custom_call.1} parent=1 // pred_check
      _
    $region7: #{tpu_custom_call.1} parent=1 // pred_check_branch
      %13 = sbr.rel (0) target = $region9
    $region8: #{tpu_custom_call.1} parent=1 // pred_region
      _
    $region9: #{tpu_custom_call.1} parent=1 // pred_fallthru
      _
    // Predicated region
    $region10: #{tpu_custom_call.1} parent=1 // pred_check
      _
    $region11: #{tpu_custom_call.1} parent=1 // pred_check_branch
      %15 = sbr.rel (0) target = $region13
    $region12: #{tpu_custom_call.1} parent=1 // pred_region
      _
    $region13: #{tpu_custom_call.1} parent=1 // pred_fallthru
      _
    // Predicated region
    $region14: #{tpu_custom_call.1} parent=1 // pred_check
      _
    $region15: #{tpu_custom_call.1} parent=1 // pred_check_branch
      %17 = sbr.rel (0) target = $region17
    $region16: #{tpu_custom_call.1} parent=1 // pred_region
      _
    $region17: #{tpu_custom_call.1} parent=1 // pred_fallthru
      _
    %v19 = vld [vmem:[%s0] sm:$0xf]
    %v20 = vld [vmem:[%s0 + $0x4] sm:$0xf]
    %v21 = vld [vmem:[%s1] sm:$0xf]
    %v22 = vld [vmem:[%s1 + $0x4] sm:$0xf]
    %v23 = vld [vmem:[%s1 + $0x8] sm:$0xf]
    %v24 = vld [vmem:[%s1 + $0xc] sm:$0xf]
    %v25 = vld [vmem:[%s2] sm:$0x1]
    %v27 = vlaneseq
    %v28 = vshrl.u32 %v27, 7
    %v29 = vsub.s32 0, %v28
    %v30 = vrot.slane %v25, %v29
    %v34 = vunpack.c.l.b16 %v19
    %v35 = vunpack.c.l.b16 %v20
    %v36 = vpack.c.b16 %v35, %v34
    %v41 = vunpack.c.l.b16 %v21
    %v42 = vunpack.c.l.b16 %v22
    %v43 = vunpack.c.l.b16 %v23
    %v44 = vunpack.c.l.b16 %v24
    %v45 = vpack.c.b16 %v42, %v41
    %v46 = vpack.c.b16 %v44, %v43
    %vm49 = vcmask 261120
    %v51 = vsel %vm49, %v36, 0
    %53 = vmatprep.subr.bf16.mxu0 0
    %54 = vmatpush1.bf16.msra.mxu0 %v45
    %55 = vmatprep.subr.bf16.mxu0 0
    %56 = vmatpush1.bf16.msra.mxu0 %v46
    %57 = vmatprep.subr.bf16.mxu0 0
    %58 = vmatpush1.bf16.msra.mxu0 0
    %59 = vmatprep.subr.bf16.mxu0 0
    %60 = vmatpush1.bf16.msra.mxu0 0
    %61 = vmatprep.subr.bf16.mxu0 0
    %62 = vmatpush1.bf16.msra.mxu0 0
    %63 = vmatprep.subr.bf16.mxu0 0
    %64 = vmatpush1.bf16.msra.mxu0 0
    %65 = vmatprep.subr.bf16.mxu0 0
    %66 = vmatpush1.bf16.msra.mxu0 0
    %67 = vmatprep.subr.bf16.mxu0 0
    %68 = vmatpush1.bf16.msra.mxu0 0
    %69 = vmatprep.subr.bf16.mxu0 0
    %70 = vmatpush1.bf16.msra.mxu0 0
    %71 = vmatprep.subr.bf16.mxu0 0
    %72 = vmatpush1.bf16.msra.mxu0 0
    %73 = vmatprep.subr.bf16.mxu0 0
    %74 = vmatpush1.bf16.msra.mxu0 0
    %75 = vmatprep.subr.bf16.mxu0 0
    %76 = vmatpush1.bf16.msra.mxu0 0
    %77 = vmatprep.subr.bf16.mxu0 0
    %78 = vmatpush1.bf16.msra.mxu0 0
    %79 = vmatprep.subr.bf16.mxu0 0
    %80 = vmatpush1.bf16.msra.mxu0 0
    %81 = vmatprep.subr.bf16.mxu0 0
    %82 = vmatpush1.bf16.msra.mxu0 0
    %83 = vmatprep.subr.bf16.mxu0 0
    %84 = vmatpush1.bf16.msra.mxu0 0
    %85 = vmatprep.mubr.bf16.mxu0 0
    %86 = vmatmul.mubr.bf16.gmra.mrb[0].mxu0 %v51
    %v87 = vpop.f32.mrb[0].mxu0
    %v88 = vadd.f32 %v30, %v87
    %v89 = vpop.f32.mrb[0].mxu0
    %v90 = vpop.f32.mrb[0].mxu0
    %v91 = vadd.f32 %v30, %v90
    %v92 = vpop.f32.mrb[0].mxu0
    %93 = vdwg.mxu0
    %v94 = vtanh.pop %v88
    %v95 = vtanh.pop %v91
    %v96 = vpack.c.bf16 %v95, %v94
    %v98 = vunpack.c.l.b16 %v96
    %v99 = vunpack.c.h.b16 %v96
    %v100 = vpack.c.b16 %v98, %v98
    %v101 = vpack.c.b16 %v99, %v99
    %v104 = vld [vmem:[%s3] sm:$0x1]
    %v106 = vpack.i.b16 %v104, %v104
    %v108 = vlaneseq
    %v109 = vshrl.u32 %v108, 7
    %v110 = vsub.s32 0, %v109
    %v111 = vrot.slane %v106, %v110
    %v112 = vmul.bf16 %v100, %v111
    %v113 = vmul.bf16 %v101, %v111
    %v114 = vunpack.c.l.bf16 %v112
    %v115 = vunpack.c.l.bf16 %v113
    %vm116 = vcmask 130048
    %v117 = vsel %vm116, %v114, 0.0
    %118 = vadd.xlane.f32.xlu0 %v117
    %v119 = vpop.xlane.xlu0 %118
    %v120 = vsel %vm116, %v115, 0.0
    %121 = vadd.xlane.f32.xlu0 %v120
    %v122 = vpop.xlane.xlu0 %121
    %v125 = vlaneseq
    %v126 = vand.u32 %v125, 127
    %v127 = vlaneseq
    %v128 = vshrl.u32 %v127, 7
    %v129 = vsub.s32 %v126, %v128
    %v130 = vrot.slane %v119, %v129
    %v131 = vlaneseq
    %v132 = vshrl.u32 %v131, 7
    %v133 = vsub.s32 %v126, %v132
    %v134 = vrot.slane %v122, %v133
    %vm135 = vcmask 1041409
    %v136 = vsel %vm135, %v134, %v130
    %vm138 = vcmask 58368
    %v139 = vsel %vm138, %v136, -inf
    %140 = vmax.xlane.f32.xlu0 %v139
    %v141 = vpop.xlane.xlu0 %140
    %v143 = vlaneseq
    %v144 = vshrl.u32 %v143, 7
    %v145 = vsub.s32 0, %v144
    %v146 = vrot.slane %v141, %v145
    %v147 = vlaneseq
    %v148 = vshrl.u32 %v147, 7
    %v149 = vsub.s32 1, %v148
    %v150 = vrot.slane %v141, %v149
    %v153 = vsub.f32 %v119, %v146
    %v154 = vsub.f32 %v122, %v150
    %v155 = vmul.f32 %v153, 1.442695
    %v156 = vpow.pop %v155
    %v157 = vmul.f32 %v154, 1.442695
    %v158 = vpow.pop %v157
    %161 = vset.pattern.permute.xlu0 0
    %162 = vperm.xlu0 %161, %v156
    %v163 = vpop.permute.xlu0 %162
    %164 = vset.pattern.permute.xlu0 0
    %165 = vperm.xlu0 %164, %v158
    %v166 = vpop.permute.xlu0 %165
    %v167 = vlaneseq
    %v168 = vshrl.u32 %v167, 7
    %v169 = vsub.s32 %v126, %v168
    %v170 = vrot.slane %v163, %v169
    %v171 = vlaneseq
    %v172 = vshrl.u32 %v171, 7
    %v173 = vsub.s32 %v126, %v172
    %v174 = vrot.slane %v166, %v173
    %v175 = vsel %vm135, %v174, %v170
    %v177 = vsel %vm138, %v175, 0.0
    %178 = vadd.xlane.f32.xlu0 %v177
    %v179 = vpop.xlane.xlu0 %178
    %v181 = vlaneseq
    %v182 = vshrl.u32 %v181, 7
    %v183 = vsub.s32 0, %v182
    %v184 = vrot.slane %v179, %v183
    %v185 = vlaneseq
    %v186 = vshrl.u32 %v185, 7
    %v187 = vsub.s32 1, %v186
    %v188 = vrot.slane %v179, %v187
    %v191 = vrcp.pop %v184
    %v192 = vmul.f32 %v156, %v191
    %v193 = vrcp.pop %v188
    %v194 = vmul.f32 %v158, %v193
    %v195 = vpack.c.bf16 %v192, %v192
    %v196 = vpack.c.bf16 %v194, %v194
    %v198 = vunpack.c.l.b16 %v195
    %199 = vset.pattern.permute.xlu0 0
    %200 = vperm.xlu0 %199, %v198
    %v201 = vpop.permute.xlu0 %200
    %v202 = vlaneseq
    %v203 = vshrl.u32 %v202, 7
    %v204 = vsub.s32 %v126, %v203
    %v205 = vrot.slane %v201, %v204
    %v206 = vpack.c.b16 %v205, %v205
    %vm207 = vcmask 64512
    %v209 = vsel %vm207, %v206, 0
    %vm211 = vcmask 1043456
    %v213 = vsel %vm211, %v19, 0
    %215 = vmatprep.subr.bf16.mxu0 0
    %216 = vmatpush1.bf16.msra.mxu0 %v213
    %217 = vmatprep.subr.bf16.mxu0 0
    %218 = vmatpush1.bf16.msra.mxu0 0
    %219 = vmatprep.subr.bf16.mxu0 0
    %220 = vmatpush1.bf16.msra.mxu0 0
    %221 = vmatprep.subr.bf16.mxu0 0
    %222 = vmatpush1.bf16.msra.mxu0 0
    %223 = vmatprep.subr.bf16.mxu0 0
    %224 = vmatpush1.bf16.msra.mxu0 0
    %225 = vmatprep.subr.bf16.mxu0 0
    %226 = vmatpush1.bf16.msra.mxu0 0
    %227 = vmatprep.subr.bf16.mxu0 0
    %228 = vmatpush1.bf16.msra.mxu0 0
    %229 = vmatprep.subr.bf16.mxu0 0
    %230 = vmatpush1.bf16.msra.mxu0 0
    %231 = vmatprep.subr.bf16.mxu0 0
    %232 = vmatpush1.bf16.msra.mxu0 0
    %233 = vmatprep.subr.bf16.mxu0 0
    %234 = vmatpush1.bf16.msra.mxu0 0
    %235 = vmatprep.subr.bf16.mxu0 0
    %236 = vmatpush1.bf16.msra.mxu0 0
    %237 = vmatprep.subr.bf16.mxu0 0
    %238 = vmatpush1.bf16.msra.mxu0 0
    %239 = vmatprep.subr.bf16.mxu0 0
    %240 = vmatpush1.bf16.msra.mxu0 0
    %241 = vmatprep.subr.bf16.mxu0 0
    %242 = vmatpush1.bf16.msra.mxu0 0
    %243 = vmatprep.subr.bf16.mxu0 0
    %244 = vmatpush1.bf16.msra.mxu0 0
    %245 = vmatprep.subr.bf16.mxu0 0
    %246 = vmatpush1.bf16.msra.mxu0 0
    %247 = vmatprep.mubr.bf16.mxu0 0
    %248 = vmatmul.mubr.bf16.gmra.mrb[0].mxu0 %v209
    %v249 = vpop.f32.mrb[0].mxu0
    %v250 = vadd.f32 0.0, %v249
    %v251 = vpop.f32.mrb[0].mxu0
    %v252 = vpop.f32.mrb[0].mxu0
    %v253 = vpop.f32.mrb[0].mxu0
    %254 = vdwg.mxu0
    %v256 = vunpack.c.l.b16 %v196
    %257 = vset.pattern.permute.xlu0 0
    %258 = vperm.xlu0 %257, %v256
    %v259 = vpop.permute.xlu0 %258
    %v260 = vlaneseq
    %v261 = vshrl.u32 %v260, 7
    %v262 = vsub.s32 %v126, %v261
    %v263 = vrot.slane %v259, %v262
    %v264 = vpack.c.b16 %v263, %v263
    %v266 = vsel %vm207, %v264, 0
    %v269 = vsel %vm211, %v20, 0
    %271 = vmatprep.subr.bf16.mxu0 0
    %272 = vmatpush1.bf16.msra.mxu0 %v269
    %273 = vmatprep.subr.bf16.mxu0 0
    %274 = vmatpush1.bf16.msra.mxu0 0
    %275 = vmatprep.subr.bf16.mxu0 0
    %276 = vmatpush1.bf16.msra.mxu0 0
    %277 = vmatprep.subr.bf16.mxu0 0
    %278 = vmatpush1.bf16.msra.mxu0 0
    %279 = vmatprep.subr.bf16.mxu0 0
    %280 = vmatpush1.bf16.msra.mxu0 0
    %281 = vmatprep.subr.bf16.mxu0 0
    %282 = vmatpush1.bf16.msra.mxu0 0
    %283 = vmatprep.subr.bf16.mxu0 0
    %284 = vmatpush1.bf16.msra.mxu0 0
    %285 = vmatprep.subr.bf16.mxu0 0
    %286 = vmatpush1.bf16.msra.mxu0 0
    %287 = vmatprep.subr.bf16.mxu0 0
    %288 = vmatpush1.bf16.msra.mxu0 0
    %289 = vmatprep.subr.bf16.mxu0 0
    %290 = vmatpush1.bf16.msra.mxu0 0
    %291 = vmatprep.subr.bf16.mxu0 0
    %292 = vmatpush1.bf16.msra.mxu0 0
    %293 = vmatprep.subr.bf16.mxu0 0
    %294 = vmatpush1.bf16.msra.mxu0 0
    %295 = vmatprep.subr.bf16.mxu0 0
    %296 = vmatpush1.bf16.msra.mxu0 0
    %297 = vmatprep.subr.bf16.mxu0 0
    %298 = vmatpush1.bf16.msra.mxu0 0
    %299 = vmatprep.subr.bf16.mxu0 0
    %300 = vmatpush1.bf16.msra.mxu0 0
    %301 = vmatprep.subr.bf16.mxu0 0
    %302 = vmatpush1.bf16.msra.mxu0 0
    %303 = vmatprep.mubr.bf16.mxu0 0
    %304 = vmatmul.mubr.bf16.gmra.mrb[0].mxu0 %v266
    %v305 = vpop.f32.mrb[0].mxu0
    %v306 = vadd.f32 0.0, %v305
    %v307 = vpop.f32.mrb[0].mxu0
    %v308 = vpop.f32.mrb[0].mxu0
    %v309 = vpop.f32.mrb[0].mxu0
    %310 = vdwg.mxu0
    %v312 = vrot.slane %v306, 7
    %vm314 = vcmask 1040384
    %v315 = vsel %vm314, %v250, %v312
    %vm316 = vcmask 254976
    %317 = vst.msk [vmem:[#allocation2] sm:$0x3] %vm316, %v315
    // Predicated region
    $region18: #{tpu_custom_call.1} parent=1 // pred_check
      _
    $region19: #{tpu_custom_call.1} parent=1 // pred_check_branch
      %319 = sbr.rel (0) target = $region21
    $region20: #{tpu_custom_call.1} parent=1 // pred_region
      %s321 = ssub.s32 32, 32
      %322 = vsyncadd [#allocation3], %s321
      %s324 = sshll.u32 [#allocation2], 4
      %s325 = int_to_ptr.vmem [resolvable:$true] %s324
      %327 = dma.vmem_to_hbm [thread:$0]  %s325, 32, %s4, [#allocation3]
    $region21: #{tpu_custom_call.1} parent=1 // pred_fallthru
      _
    // Predicated region
    $region22: #{tpu_custom_call.1} parent=1 // pred_check
      _
    $region23: #{tpu_custom_call.1} parent=1 // pred_check_branch
      %329 = sbr.rel (0) target = $region25
    $region24: #{tpu_custom_call.1} parent=1 // pred_region
      %330 = dma.done [#allocation3], 32
    $region25: #{tpu_custom_call.1} parent=1 // pred_fallthru
      _
    %331 = vsyncpa [#allocation3], 1

</llo_original>
